<compile_context>
chip_gen: v7x
topology: tpu7x:2x2x1
jax: 0.10.0
libtpu: 0.0.40
codegen_flags: <defaults>
</compile_context>

<pallas_src>
import functools
import math

import jax
import jax.numpy as jnp
from jax.experimental import pallas as pl
from jax.experimental.pallas import tpu as pltpu


def _round_up(x, m):
    return (x + m - 1) // m * m


# ---- shared-range-reduction sin/cos (Cephes sinf/cosf style, f32) ----------
_TWO_OVER_PI = 0.6366197723675814
_DP1 = 1.5703125                       # pi/2 split (Cody-Waite, 3 parts)
_DP2 = 4.837512969970703125e-4
_DP3 = 7.54978995489188216e-8
_SIN_P0 = -1.9515295891e-4
_SIN_P1 = 8.3321608736e-3
_SIN_P2 = -1.6666654611e-1
_COS_P0 = 2.443315711809948e-5
_COS_P1 = -1.388731625493765e-3
_COS_P2 = 4.166664568298827e-2


def _sincos_shared(a):
    """Return (sin(a), cos(a)) with one shared range reduction (f32, |a| <~ 1e5)."""
    n = jnp.round(a * _TWO_OVER_PI)                  # nearest multiple of pi/2
    q = n.astype(jnp.int32) & 3                      # quadrant, correct for a < 0
    r = ((a - n * _DP1) - n * _DP2) - n * _DP3       # reduced arg in [-pi/4, pi/4]
    z = r * r
    sin_r = ((_SIN_P0 * z + _SIN_P1) * z + _SIN_P2) * z * r + r
    cos_r = ((_COS_P0 * z + _COS_P1) * z + _COS_P2) * z * z - 0.5 * z + 1.0
    odd = (q & 1) == 1
    sin_base = jnp.where(odd, cos_r, sin_r)
    cos_base = jnp.where(odd, sin_r, cos_r)
    sin_a = jnp.where((q & 2) == 2, -sin_base, sin_base)
    cos_a = jnp.where(((q + 1) & 2) == 2, -cos_base, cos_base)
    return sin_a, cos_a


# ---- kernels ----------------------------------------------------------------
def _fourier_kernel_split(t_ref, freq_ref, out_ref, *, half):
    # t_ref: (tn, 1) f32; freq_ref: (1, half) f32 (half % 128 == 0, resident)
    # out_ref: (tn, 2*half)  -> cos half then sin half, both lane-aligned.
    a = t_ref[...] * freq_ref[...]                   # (tn, half) broadcast mul
    sin_a, cos_a = _sincos_shared(a)                 # one shared range reduction
    out_ref[:, :half] = cos_a.astype(out_ref.dtype)
    out_ref[:, half:] = sin_a.astype(out_ref.dtype)


def _fourier_kernel_fused(t_ref, wp_ref, out_ref):
    # t_ref: (tn, 1) f32; wp_ref: (2, Dp) f32 resident constant:
    #   row 0 = [freqs, freqs, 0-pad]; row 1 = [pi/2]*half ++ zeros.
    # out_ref: (tn, Dp) block over a (N, dim) array -> trailing lanes masked.
    args = t_ref[...] * wp_ref[0:1, :] + wp_ref[1:2, :]
    out_ref[...] = jnp.sin(args).astype(out_ref.dtype)   # cos(x) == sin(x + pi/2)


# ---- wrapper ----------------------------------------------------------------
def fourier_embed(t, dim, max_period=10000.0, out_dtype=jnp.float32,
                  target_block_bytes=4 << 20):
    """JAX/Pallas equivalent of Fourier_Embed(dim)(t).  t: (N,) values (may be fractional)."""
    N = int(t.shape[0])
    half = dim // 2
    if N == 0 or half == 0:
        # Empty batch, or dim in {0, 1} (output is all zeros).
        return jnp.zeros((N, dim), out_dtype)

    freqs = jnp.exp(
        -math.log(max_period) * jnp.arange(half, dtype=jnp.float32) / float(half)
    )
    t2 = t.astype(jnp.float32).reshape(N, 1)

    # ---- row tiling: ~4 MiB output block, >= 2 (even-ish) grid steps --------
    Dp = _round_up(dim, 128)                          # lane-dense block width
    itemsize = jnp.dtype(out_dtype).itemsize
    row_align = max(8, 32 // itemsize)                # sublane packing granularity
    bytes_per_row = itemsize * Dp
    rows_a = _round_up(N, row_align)
    tn = max(row_align, (target_block_bytes // bytes_per_row) // row_align * row_align)
    tn = min(tn, rows_a)
    steps = -(-N // tn)
    if steps == 1 and rows_a >= 2 * row_align:
        tn = _round_up(rows_a // 2, row_align)        # give both v7x TCs a share
    elif steps >= 3 and steps % 2 == 1:
        tn_even = max(row_align, _round_up(-(-N // (steps + 1)), row_align))
        if -(-N // tn_even) % 2 == 0:
            tn = tn_even                              # balance the 2 TCs
    grid = (-(-N // tn),)

    cost = pl.CostEstimate(
        flops=40 * N * dim,
        transcendentals=N * dim,
        bytes_accessed=N * dim * itemsize + 4 * N,
    )
    cparams = pltpu.CompilerParams(dimension_semantics=("parallel",))

    if dim % 256 == 0:
        # Fast path: dim even, half % 128 == 0, Dp == dim.  Half-width args,
        # shared range reduction, lane-aligned cos/sin column stores.
        kernel = functools.partial(_fourier_kernel_split, half=half)
        return pl.pallas_call(
            kernel,
            out_shape=jax.ShapeDtypeStruct((N, dim), out_dtype),
            grid=grid,
            in_specs=[
                pl.BlockSpec((tn, 1), lambda i: (i, 0)),
                pl.BlockSpec((1, half), lambda i: (0, 0)),   # resident constant
            ],
            out_specs=pl.BlockSpec((tn, dim), lambda i: (i, 0)),
            compiler_params=cparams,
            cost_estimate=cost,
        )(t2, freqs.reshape(1, half))

    # General path (odd / unaligned dim): fused sin(t*w + phi) over the
    # 128-padded row.  Padding columns have w == phi == 0 -> sin(0) == 0,
    # which also provides the odd-dim zero column.  Partial row / lane blocks
    # are handled by Pallas' masked stores -- no epilogue slices.
    # TODO(synk): for |t| >~ 1e5 the f32 phase-shift trick loses accuracy; use
    # the dim % 256 == 0 path (or pad dim) for extreme timestep magnitudes.
    wp = jnp.zeros((2, Dp), jnp.float32)
    wp = wp.at[0, :half].set(freqs).at[0, half:2 * half].set(freqs)
    wp = wp.at[1, :half].set(math.pi / 2.0)
    return pl.pallas_call(
        _fourier_kernel_fused,
        out_shape=jax.ShapeDtypeStruct((N, dim), out_dtype),
        grid=grid,
        in_specs=[
            pl.BlockSpec((tn, 1), lambda i: (i, 0)),
            pl.BlockSpec((2, Dp), lambda i: (0, 0)),         # resident constant
        ],
        out_specs=pl.BlockSpec((tn, Dp), lambda i: (i, 0)),
        compiler_params=cparams,
        cost_estimate=cost,
    )(t2, wp)


def fourier_embed_ref(t, dim, max_period=10000.0):
    """Pure-JAX reference mirroring the PyTorch code exactly."""
    half = dim // 2
    if half == 0:
        return jnp.zeros((t.shape[0], dim), jnp.float32)
    freqs = jnp.exp(
        -math.log(max_period) * jnp.arange(half, dtype=jnp.float32) / float(half)
    )
    args = t.astype(jnp.float32)[:, None] * freqs[None]
    emb = jnp.concatenate([jnp.cos(args), jnp.sin(args)], axis=-1)
    if dim % 2:
        emb = jnp.concatenate([emb, jnp.zeros_like(emb[:, :1])], axis=-1)
    return emb


if __name__ == "__main__":
    key = jax.random.PRNGKey(0)

    # (N, dim, out_dtype): aligned fast path, partial trailing row block,
    # narrow masked-lane dims, odd dim, and a bf16-output run.
    cases = [
        (8, 256, jnp.float32),
        (20, 512, jnp.float32),
        (8, 32, jnp.float32),
        (8, 33, jnp.float32),
        (20, 64, jnp.float32),
        (16, 256, jnp.bfloat16),
    ]
    failures = []
    for idx, (N, dim, dt) in enumerate(cases):
        k = jax.random.fold_in(key, idx)
        # Fractional "timestep" values, like diffusion timesteps in [0, 1000).
        t = jax.random.uniform(k, (N,), dtype=jnp.float32) * 1000.0

        out = jax.block_until_ready(fourier_embed(t, dim, out_dtype=dt))
        ref = fourier_embed_ref(t, dim)

        assert out.shape == (N, dim), (out.shape, (N, dim))
        atol = 5e-4 if jnp.dtype(dt) == jnp.dtype(jnp.float32) else 2e-2
        if not bool(jnp.allclose(out.astype(jnp.float32), ref, atol=atol, rtol=1e-5)):
            err = float(jnp.max(jnp.abs(out.astype(jnp.float32) - ref)))
            failures.append((N, dim, str(jnp.dtype(dt)), err))

    assert not failures, f"mismatches: {failures}"
    print("KERNEL_OK")
</pallas_src>

<mosaic_0001>
module attributes {stable_mosaic.version = 11 : i64} {
  func.func @_fourier_kernel_split(%arg0: i32, %arg1: memref<8x1xf32, #tpu.memory_space<vmem>>, %arg2: memref<1x128xf32, #tpu.memory_space<vmem>>, %arg3: memref<8x256xf32, #tpu.memory_space<vmem>>) attributes {dimension_semantics = [#tpu.dimension_semantics<parallel>], iteration_bounds = array<i64: 1>, scalar_prefetch = 0 : i64, scratch_operands = 0 : i64, tpu.core_type = #tpu.core_type<tc>, window_params = [{transform_indices = @transform_0, window_bounds = array<i64: 8, 1>}, {pipeline_mode = #tpu.pipeline_mode<synchronous>, transform_indices = @transform_1, window_bounds = array<i64: 1, 128>}, {transform_indices = @transform_2, window_bounds = array<i64: 8, 256>}]} {
    %c0 = arith.constant 0 : index
    %c0_0 = arith.constant 0 : index
    %0 = vector.load %arg1[%c0, %c0_0] : memref<8x1xf32, #tpu.memory_space<vmem>>, vector<8x1xf32>
    %c0_1 = arith.constant 0 : index
    %c0_2 = arith.constant 0 : index
    %1 = vector.load %arg2[%c0_1, %c0_2] : memref<1x128xf32, #tpu.memory_space<vmem>>, vector<1x128xf32>
    %2 = vector.broadcast %0 : vector<8x1xf32> to vector<8x128xf32>
    %3 = vector.broadcast %1 : vector<1x128xf32> to vector<8x128xf32>
    %4 = arith.mulf %2, %3 : vector<8x128xf32>
    %cst = arith.constant 0.636619746 : f32
    %5 = vector.broadcast %cst : f32 to vector<8x128xf32>
    %6 = arith.mulf %4, %5 : vector<8x128xf32>
    %7 = math.roundeven %6 : vector<8x128xf32>
    %8 = arith.fptosi %7 : vector<8x128xf32> to vector<8x128xi32>
    %c3_i32 = arith.constant 3 : i32
    %9 = vector.broadcast %c3_i32 : i32 to vector<8x128xi32>
    %10 = arith.andi %8, %9 : vector<8x128xi32>
    %cst_3 = arith.constant 1.5703125 : f32
    %11 = vector.broadcast %cst_3 : f32 to vector<8x128xf32>
    %12 = arith.mulf %7, %11 : vector<8x128xf32>
    %13 = arith.subf %4, %12 : vector<8x128xf32>
    %cst_4 = arith.constant 4.83751297E-4 : f32
    %14 = vector.broadcast %cst_4 : f32 to vector<8x128xf32>
    %15 = arith.mulf %7, %14 : vector<8x128xf32>
    %16 = arith.subf %13, %15 : vector<8x128xf32>
    %cst_5 = arith.constant 7.549790e-08 : f32
    %17 = vector.broadcast %cst_5 : f32 to vector<8x128xf32>
    %18 = arith.mulf %7, %17 : vector<8x128xf32>
    %19 = arith.subf %16, %18 : vector<8x128xf32>
    %20 = arith.mulf %19, %19 : vector<8x128xf32>
    %cst_6 = arith.constant -1.95152956E-4 : f32
    %21 = vector.broadcast %cst_6 : f32 to vector<8x128xf32>
    %22 = arith.mulf %21, %20 : vector<8x128xf32>
    %cst_7 = arith.constant 0.00833216123 : f32
    %23 = vector.broadcast %cst_7 : f32 to vector<8x128xf32>
    %24 = arith.addf %22, %23 : vector<8x128xf32>
    %25 = arith.mulf %24, %20 : vector<8x128xf32>
    %cst_8 = arith.constant -0.166666552 : f32
    %26 = vector.broadcast %cst_8 : f32 to vector<8x128xf32>
    %27 = arith.addf %25, %26 : vector<8x128xf32>
    %28 = arith.mulf %27, %20 : vector<8x128xf32>
    %29 = arith.mulf %28, %19 : vector<8x128xf32>
    %30 = arith.addf %29, %19 : vector<8x128xf32>
    %cst_9 = arith.constant 2.44331568E-5 : f32
    %31 = vector.broadcast %cst_9 : f32 to vector<8x128xf32>
    %32 = arith.mulf %31, %20 : vector<8x128xf32>
    %cst_10 = arith.constant -0.00138873165 : f32
    %33 = vector.broadcast %cst_10 : f32 to vector<8x128xf32>
    %34 = arith.addf %32, %33 : vector<8x128xf32>
    %35 = arith.mulf %34, %20 : vector<8x128xf32>
    %cst_11 = arith.constant 0.0416666456 : f32
    %36 = vector.broadcast %cst_11 : f32 to vector<8x128xf32>
    %37 = arith.addf %35, %36 : vector<8x128xf32>
    %38 = arith.mulf %37, %20 : vector<8x128xf32>
    %39 = arith.mulf %38, %20 : vector<8x128xf32>
    %cst_12 = arith.constant 5.000000e-01 : f32
    %40 = vector.broadcast %cst_12 : f32 to vector<8x128xf32>
    %41 = arith.mulf %40, %20 : vector<8x128xf32>
    %42 = arith.subf %39, %41 : vector<8x128xf32>
    %cst_13 = arith.constant 1.000000e+00 : f32
    %43 = vector.broadcast %cst_13 : f32 to vector<8x128xf32>
    %44 = arith.addf %42, %43 : vector<8x128xf32>
    %c1_i32 = arith.constant 1 : i32
    %45 = vector.broadcast %c1_i32 : i32 to vector<8x128xi32>
    %46 = arith.andi %10, %45 : vector<8x128xi32>
    %c1_i32_14 = arith.constant 1 : i32
    %47 = vector.broadcast %c1_i32_14 : i32 to vector<8x128xi32>
    %48 = arith.cmpi eq, %46, %47 : vector<8x128xi32>
    %49 = arith.select %48, %44, %30 : vector<8x128xi1>, vector<8x128xf32>
    %50 = arith.select %48, %30, %44 : vector<8x128xi1>, vector<8x128xf32>
    %c2_i32 = arith.constant 2 : i32
    %51 = vector.broadcast %c2_i32 : i32 to vector<8x128xi32>
    %52 = arith.andi %10, %51 : vector<8x128xi32>
    %c2_i32_15 = arith.constant 2 : i32
    %53 = vector.broadcast %c2_i32_15 : i32 to vector<8x128xi32>
    %54 = arith.cmpi eq, %52, %53 : vector<8x128xi32>
    %cst_16 = arith.constant 0.000000e+00 : f32
    %55 = vector.broadcast %cst_16 : f32 to vector<8x128xf32>
    %56 = arith.subf %55, %49 : vector<8x128xf32>
    %57 = arith.select %54, %56, %49 : vector<8x128xi1>, vector<8x128xf32>
    %c1_i32_17 = arith.constant 1 : i32
    %58 = vector.broadcast %c1_i32_17 : i32 to vector<8x128xi32>
    %59 = arith.addi %10, %58 : vector<8x128xi32>
    %c2_i32_18 = arith.constant 2 : i32
    %60 = vector.broadcast %c2_i32_18 : i32 to vector<8x128xi32>
    %61 = arith.andi %59, %60 : vector<8x128xi32>
    %c2_i32_19 = arith.constant 2 : i32
    %62 = vector.broadcast %c2_i32_19 : i32 to vector<8x128xi32>
    %63 = arith.cmpi eq, %61, %62 : vector<8x128xi32>
    %cst_20 = arith.constant 0.000000e+00 : f32
    %64 = vector.broadcast %cst_20 : f32 to vector<8x128xf32>
    %65 = arith.subf %64, %50 : vector<8x128xf32>
    %66 = arith.select %63, %65, %50 : vector<8x128xi1>, vector<8x128xf32>
    %c0_21 = arith.constant 0 : index
    %c0_22 = arith.constant 0 : index
    %67 = vector.load %arg3[%c0_21, %c0_22] : memref<8x256xf32, #tpu.memory_space<vmem>>, vector<8x128xf32>
    tpu.vector_store %arg3[%c0_21, %c0_22], %66 {strides = array<i32>} : memref<8x256xf32, #tpu.memory_space<vmem>>, vector<8x128xf32>,
    %c0_23 = arith.constant 0 : index
    %c128 = arith.constant 128 : index
    %68 = vector.load %arg3[%c0_23, %c128] : memref<8x256xf32, #tpu.memory_space<vmem>>, vector<8x128xf32>
    tpu.vector_store %arg3[%c0_23, %c128], %57 {strides = array<i32>} : memref<8x256xf32, #tpu.memory_space<vmem>>, vector<8x128xf32>,
    return
  }
  func.func @transform_0(%arg0: i32) -> (i32, i32) {
    %c0_i32 = arith.constant 0 : i32
    %c0_i32_0 = arith.constant 0 : i32
    return %arg0, %c0_i32 : i32, i32
  }
  func.func @transform_1(%arg0: i32) -> (i32, i32) {
    %c0_i32 = arith.constant 0 : i32
    %c0_i32_0 = arith.constant 0 : i32
    %c0_i32_1 = arith.constant 0 : i32
    return %c0_i32, %c0_i32_0 : i32, i32
  }
  func.func @transform_2(%arg0: i32) -> (i32, i32) {
    %c0_i32 = arith.constant 0 : i32
    %c0_i32_0 = arith.constant 0 : i32
    return %arg0, %c0_i32 : i32, i32
  }
}

</mosaic_0001>

<llo_original>
// kernel: tpu_custom_call.1
$region0: #{tpu_custom_call.1}
  #allocation0 [shape = 'u32[]', space=smem, size = 0x4, offset = 0x4, fixed_abs, tag = 'smem constant byte address 0x4 - core index']
  #allocation1 [shape = 'u32[144,128]{1,0:T(1,128)}', space=vmem, size = 0x12000, scoped, tag = 'internal scratch']
  %s0 = inlined_call_operand.vmem [shape: f32[8,1], index: 0, kind: input, shape index: {}]
  %s1 = inlined_call_operand.vmem [shape: f32[1,128], index: 1, kind: input, shape index: {}]
  %s2 = inlined_call_operand.hbm [shape: f32[8,256], index: 2, kind: output, shape index: {}]
  %s3 = sld [smem:[#allocation0]]
  $region18: #{tpu_custom_call.1} parent=0
    _
  %s5 = ssub.s32 1, %s3
  %s6 = scalar_select 0, %s5, %s3
  $region1: #{tpu_custom_call.1} parent=0
    #allocation2 [shape = 'u8[8192]{0}', space=vmem, size = 0x2000, scoped, tag = 'output window, operand 0, single buffered']
    #allocation3 [shape = 's32[1]{0}', space=sflag, size = 0x4, scoped, tag = 'scoped memory for tpu_custom_call.1']
    %7 = vsyncpa [#allocation3], 0
    // Predicated region
    $region2: #{tpu_custom_call.1} parent=1 // pred_check
      _
    $region3: #{tpu_custom_call.1} parent=1 // pred_check_branch
      %9 = sbr.rel (0) target = $region5
    $region4: #{tpu_custom_call.1} parent=1 // pred_region
      _
    $region5: #{tpu_custom_call.1} parent=1 // pred_fallthru
      _
    // Predicated region
    $region6: #{tpu_custom_call.1} parent=1 // pred_check
      _
    $region7: #{tpu_custom_call.1} parent=1 // pred_check_branch
      %11 = sbr.rel (0) target = $region9
    $region8: #{tpu_custom_call.1} parent=1 // pred_region
      _
    $region9: #{tpu_custom_call.1} parent=1 // pred_fallthru
      _
    %v12 = vld [vmem:[%s0] sm:$0xff]
    %v13 = vld [vmem:[%s1] sm:$0x1]
    %15 = vset.pattern.permute.xlu0 0
    %16 = vperm.xlu0 %15, %v12
    %v17 = vpop.permute.xlu0 %16
    %v20 = vlaneseq
    %v21 = vshrl.u32 %v20, 7
    %v22 = vsub.s32 0, %v21
    %v23 = vrot.slane %v13, %v22
    %v25 = vmul.f32 %v17, %v23
    %v26 = vmul.f32 %v25, 0.63661975
    %v27 = vround.ne.pseudo %v26
    %v28 = vcvt.f32.s32.ties.to.even %v26
    %v29 = vand.u32 %v28, 3
    %v30 = vmul.f32 %v27, 1.5703125
    %v31 = vsub.f32 %v25, %v30
    %v32 = vmul.f32 %v27, 0.0004837513
    %v33 = vsub.f32 %v31, %v32
    %v34 = vmul.f32 %v27, 7.54979e-08
    %v35 = vsub.f32 %v33, %v34
    %v36 = vmul.f32 %v35, %v35
    %v37 = vmul.f32 %v36, -0.00019515296
    %v38 = vadd.f32 %v37, 0.008332161
    %v39 = vmul.f32 %v38, %v36
    %v40 = vadd.f32 %v39, -0.16666655
    %v41 = vmul.f32 %v40, %v36
    %v42 = vmul.f32 %v41, %v35
    %v43 = vadd.f32 %v42, %v35
    %v44 = vmul.f32 %v36, 2.4433157e-05
    %v45 = vadd.f32 %v44, -0.0013887316
    %v46 = vmul.f32 %v45, %v36
    %v47 = vadd.f32 %v46, 0.041666646
    %v48 = vmul.f32 %v47, %v36
    %v49 = vmul.f32 %v48, %v36
    %v50 = vmul.f32 %v36, 0.5
    %v51 = vsub.f32 %v49, %v50
    %v52 = vadd.f32 %v51, 1.0
    %v53 = vand.u32 %v29, 1
    %vm54 = vcmp.eq.s32.totalorder %v53, 1
    %v55 = vsel %vm54, %v52, %v43
    %v56 = vsel %vm54, %v43, %v52
    %v57 = vand.u32 %v29, 2
    %vm58 = vcmp.eq.s32.totalorder %v57, 2
    %v59 = vsub.f32 0.0, %v55
    %v60 = vsel %vm58, %v59, %v55
    %v61 = vadd.s32 %v29, 1
    %v62 = vand.u32 %v61, 2
    %vm63 = vcmp.eq.s32.totalorder %v62, 2
    %v64 = vsub.f32 0.0, %v56
    %v65 = vsel %vm63, %v64, %v56
    %66 = vst [vmem:[#allocation2] sm:$0xff] %v65
    %67 = vst [vmem:[#allocation2 + $0x8] sm:$0xff] %v60
    // Predicated region
    $region10: #{tpu_custom_call.1} parent=1 // pred_check
      _
    $region11: #{tpu_custom_call.1} parent=1 // pred_check_branch
      %69 = sbr.rel (0) target = $region13
    $region12: #{tpu_custom_call.1} parent=1 // pred_region
      %s71 = ssub.s32 256, 256
      %72 = vsyncadd [#allocation3], %s71
      %s74 = sshll.u32 [#allocation2], 4
      %s75 = int_to_ptr.vmem [resolvable:$true] %s74
      %77 = dma.vmem_to_hbm [thread:$0]  %s75, 256, %s2, [#allocation3]
    $region13: #{tpu_custom_call.1} parent=1 // pred_fallthru
      _
    // Predicated region
    $region14: #{tpu_custom_call.1} parent=1 // pred_check
      _
    $region15: #{tpu_custom_call.1} parent=1 // pred_check_branch
      %79 = sbr.rel (0) target = $region17
    $region16: #{tpu_custom_call.1} parent=1 // pred_region
      %80 = dma.done [#allocation3], 256
    $region17: #{tpu_custom_call.1} parent=1 // pred_fallthru
      _
    %81 = vsyncpa [#allocation3], 1

</llo_original>
